<compile_context>
chip_gen: v6e
topology: v6e:2x2x1
jax: 0.10.0
libtpu: 0.0.40
codegen_flags: <defaults>
</compile_context>

<pallas_src>
import functools

import jax
import jax.numpy as jnp
from jax.experimental import pallas as pl
from jax.experimental.pallas import tpu as pltpu


def _cnn_kernel(x_ref, w_ref, b_ref, o_ref, *, l_out):
    """Fused conv(im2col matmul) + masked max-over-time + bias + ReLU.

    x_ref: (b, l_pad, K) bf16   w_ref: (K, Fp) bf16
    b_ref: (1, Fp) f32          o_ref: (b, Fp) f32
    """
    x = x_ref[...]
    w = w_ref[...]
    # Single contraction over the im2col'd (k*C) axis; f32 accumulator on MXU.
    acc = jax.lax.dot_general(
        x, w,
        dimension_numbers=(((2,), (0,)), ((), ())),
        preferred_element_type=jnp.float32)            # (b, l_pad, Fp)

    # Mask the zero-padded time rows so they never win the max.
    t = jax.lax.broadcasted_iota(jnp.int32, acc.shape, 1)
    acc = jnp.where(t < l_out, acc, -jnp.inf)

    m = jnp.max(acc, axis=1)                           # (b, Fp)  (XLU sublane reduce)
    # NOTE: relu(max_t(acc) + bias) == max_t(relu(acc + bias)) ONLY because the
    # bias is constant over time and ReLU is monotone. Do not "fix" this order.
    o_ref[...] = jnp.maximum(m + b_ref[...], 0.0)


@functools.partial(jax.jit, static_argnames=("k",))
def cnn_forward(x_ncl, weight_fck, bias_f, k):
    """x_ncl: (b, C, L) like PyTorch; weight_fck: (f, C, k); bias_f: (f,)."""
    b, c, l = x_ncl.shape
    f = weight_fck.shape[0]
    l_out = l - k + 1
    l_pad = ((l_out + 7) // 8) * 8          # sublane-aligned time axis
    kc = k * c                              # im2col contraction depth
    fp = ((f + 127) // 128) * 128           # lane-dense filter dim

    # ---- layout / im2col prep (pure glue; fuses with pallas_call under jit) ----
    x_blc = jnp.transpose(x_ncl, (0, 2, 1))                           # (b, L, C)
    # im2col, tap-major on last axis: xcol[..., j*C + c] = x[:, t+j, c]
    xcol = jnp.concatenate([x_blc[:, j:j + l_out, :] for j in range(k)],
                           axis=-1)                                    # (b, l_out, k*C)
    xcol = jnp.pad(xcol, ((0, 0), (0, l_pad - l_out), (0, 0)))
    xcol = xcol.astype(jnp.bfloat16)                                   # (b, l_pad, k*C)

    # weight (f, C, k) -> (k, C, f) -> (k*C, f) so w2d[j*C + c, fo] = W[fo, c, j]
    w2d = jnp.transpose(weight_fck, (2, 1, 0)).reshape(kc, f)
    w2d = jnp.pad(w2d, ((0, 0), (0, fp - f))).astype(jnp.bfloat16)     # (k*C, Fp)
    b2d = jnp.pad(bias_f.reshape(1, f), ((0, 0), (0, fp - f))).astype(jnp.float32)

    kernel = functools.partial(_cnn_kernel, l_out=l_out)

    # Tiny problem: single block, everything resident in VMEM (~100 KB total).
    # TODO(synk): if batch grows, add a grid over b (marked "parallel") with
    # weights on a constant index_map, and re-derive the tile for v7x's 64 MiB VMEM.
    out_p = pl.pallas_call(
        kernel,
        out_shape=jax.ShapeDtypeStruct((b, fp), jnp.float32),
        in_specs=[
            pl.BlockSpec(memory_space=pltpu.MemorySpace.VMEM),
            pl.BlockSpec(memory_space=pltpu.MemorySpace.VMEM),
            pl.BlockSpec(memory_space=pltpu.MemorySpace.VMEM),
        ],
        out_specs=pl.BlockSpec(memory_space=pltpu.MemorySpace.VMEM),
    )(xcol, w2d, b2d)

    return out_p[:, :f]


def cnn_reference(x_ncl, weight_fck, bias_f, k):
    """Pure-JAX f32 reference matching torch semantics (Conv1d -> ReLU -> max dim=2)."""
    conv = jax.lax.conv_general_dilated(
        x_ncl.astype(jnp.float32), weight_fck.astype(jnp.float32),
        window_strides=(1,), padding="VALID",
        dimension_numbers=("NCH", "OIH", "NCH"))
    conv = conv + bias_f[None, :, None]
    return jnp.max(jnp.maximum(conv, 0.0), axis=2)


if __name__ == "__main__":
    # Module hyper-parameters (small, consistent with the forward signature).
    b = 8                # batch of words
    char_emb_size = 32   # input channels
    f = 32               # number of filters (output channels)
    max_word_length = 16
    k = 5                # conv window size  -> L_out = 12

    key = jax.random.PRNGKey(0)
    kx, kw, kb = jax.random.split(key, 3)

    bound = 1.0 / jnp.sqrt(char_emb_size * k)
    x = jax.random.normal(kx, (b, char_emb_size, max_word_length), jnp.float32)
    weight = jax.random.uniform(kw, (f, char_emb_size, k), jnp.float32, -bound, bound)
    bias = jax.random.uniform(kb, (f,), jnp.float32, -bound, bound)

    out = cnn_forward(x, weight, bias, k)
    out = jax.block_until_ready(out)

    ref = cnn_reference(x, weight, bias, k)
    assert out.shape == (b, f), out.shape
    # bf16 inputs (f32 accumulation) -> looser tolerance than the pure-f32 version.
    assert jnp.allclose(out, ref, atol=3e-2, rtol=3e-2), float(jnp.max(jnp.abs(out - ref)))

    print("KERNEL_OK")
</pallas_src>

<mosaic_0001>
module attributes {stable_mosaic.version = 11 : i64} {
  func.func @_cnn_kernel(%arg0: memref<8x16x160xbf16, #tpu.memory_space<vmem>>, %arg1: memref<160x128xbf16, #tpu.memory_space<vmem>>, %arg2: memref<1x128xf32, #tpu.memory_space<vmem>>, %arg3: memref<8x128xf32, #tpu.memory_space<vmem>>) attributes {dimension_semantics = [], scalar_prefetch = 0 : i64, scratch_operands = 0 : i64, tpu.core_type = #tpu.core_type<tc>} {
    %c0 = arith.constant 0 : index
    %c0_0 = arith.constant 0 : index
    %c0_1 = arith.constant 0 : index
    %0 = vector.load %arg0[%c0, %c0_0, %c0_1] : memref<8x16x160xbf16, #tpu.memory_space<vmem>>, vector<8x16x160xbf16>
    %c0_2 = arith.constant 0 : index
    %c0_3 = arith.constant 0 : index
    %1 = vector.load %arg1[%c0_2, %c0_3] : memref<160x128xbf16, #tpu.memory_space<vmem>>, vector<160x128xbf16>
    %cst = arith.constant dense<0.000000e+00> : vector<8x16x128xf32>
    %2 = tpu.matmul %0, %1, %cst {dimension_numbers = #tpu.dot_dimension_numbers<[2], [0], [0, 1], [1], [0, 0, 0, 1, 1, 1], [], []>} : vector<8x16x160xbf16>, vector<160x128xbf16>, vector<8x16x128xf32> -> vector<8x16x128xf32>
    %3 = tpu.iota {dimensions = array<i32: 1>} : vector<8x16x128xi32>
    %c12_i32 = arith.constant 12 : i32
    %4 = vector.broadcast %c12_i32 : i32 to vector<8x16x128xi32>
    %5 = arith.cmpi slt, %3, %4 : vector<8x16x128xi32>
    %cst_4 = arith.constant 0xFF800000 : f32
    %6 = vector.broadcast %cst_4 : f32 to vector<8x16x128xf32>
    %7 = arith.select %5, %2, %6 : vector<8x16x128xi1>, vector<8x16x128xf32>
    %cst_5 = arith.constant dense<0xFF800000> : vector<8x128xf32>
    %8 = vector.multi_reduction <maximumf>, %7, %cst_5 [1] : vector<8x16x128xf32> to vector<8x128xf32>
    %c0_6 = arith.constant 0 : index
    %c0_7 = arith.constant 0 : index
    %9 = vector.load %arg2[%c0_6, %c0_7] : memref<1x128xf32, #tpu.memory_space<vmem>>, vector<1x128xf32>
    %10 = vector.broadcast %9 : vector<1x128xf32> to vector<8x128xf32>
    %11 = arith.addf %8, %10 : vector<8x128xf32>
    %cst_8 = arith.constant 0.000000e+00 : f32
    %12 = vector.broadcast %cst_8 : f32 to vector<8x128xf32>
    %13 = arith.maximumf %11, %12 : vector<8x128xf32>
    %c0_9 = arith.constant 0 : index
    %c0_10 = arith.constant 0 : index
    %14 = vector.load %arg3[%c0_9, %c0_10] : memref<8x128xf32, #tpu.memory_space<vmem>>, vector<8x128xf32>
    tpu.vector_store %arg3[%c0_9, %c0_10], %13 {strides = array<i32>} : memref<8x128xf32, #tpu.memory_space<vmem>>, vector<8x128xf32>,
    return
  }
}

</mosaic_0001>

<llo_original>
// kernel: cnn_forward.1
$region0: #{cnn_forward.1}
  #allocation0 [shape = 'u32[]', space=smem, size = 0x4, offset = 0x4, fixed_abs, tag = 'smem constant byte address 0x4 - core index']
  #allocation1 [shape = 'u32[144,128]{1,0:T(1,128)}', space=vmem, size = 0x12000, scoped, tag = 'internal scratch']
  %s0 = inlined_call_operand.vmem [shape: bf16[8,16,160], index: 0, kind: input, shape index: {}]
  %s1 = inlined_call_operand.vmem [shape: bf16[160,128], index: 1, kind: input, shape index: {}]
  %s2 = inlined_call_operand.vmem [shape: f32[1,128], index: 2, kind: input, shape index: {}]
  %s3 = inlined_call_operand.hbm [shape: f32[8,128], index: 3, kind: output, shape index: {}]
  %s4 = sld [smem:[#allocation0]]
  $region22: #{cnn_forward.1} parent=0
    _
  %s6 = ssub.s32 1, %s4
  %s7 = scalar_select 0, %s6, %s4
  $region1: #{cnn_forward.1} parent=0
    #allocation2 [shape = 'u8[4096]{0}', space=vmem, size = 0x1000, scoped, tag = 'output window, operand 0, single buffered']
    #allocation3 [shape = 's32[1]{0}', space=sflag, size = 0x4, scoped, tag = 'scoped memory for cnn_forward.1']
    %8 = vsyncpa [#allocation3], 0
    // Predicated region
    $region2: #{cnn_forward.1} parent=1 // pred_check
      _
    $region3: #{cnn_forward.1} parent=1 // pred_check_branch
      %10 = sbr.rel (0) target = $region5
    $region4: #{cnn_forward.1} parent=1 // pred_region
      _
    $region5: #{cnn_forward.1} parent=1 // pred_fallthru
      _
    // Predicated region
    $region6: #{cnn_forward.1} parent=1 // pred_check
      _
    $region7: #{cnn_forward.1} parent=1 // pred_check_branch
      %12 = sbr.rel (0) target = $region9
    $region8: #{cnn_forward.1} parent=1 // pred_region
      _
    $region9: #{cnn_forward.1} parent=1 // pred_fallthru
      _
    // Predicated region
    $region10: #{cnn_forward.1} parent=1 // pred_check
      _
    $region11: #{cnn_forward.1} parent=1 // pred_check_branch
      %14 = sbr.rel (0) target = $region13
    $region12: #{cnn_forward.1} parent=1 // pred_region
      _
    $region13: #{cnn_forward.1} parent=1 // pred_fallthru
      _
    %v16 = vld [vmem:[%s0] sm:$0xff]
    %v17 = vld [vmem:[%s0 + $0x8] sm:$0xff]
    %v18 = vld [vmem:[%s0 + $0x10] sm:$0xff]
    %v19 = vld [vmem:[%s0 + $0x18] sm:$0xff]
    %v20 = vld [vmem:[%s0 + $0x20] sm:$0xff]
    %v21 = vld [vmem:[%s0 + $0x28] sm:$0xff]
    %v22 = vld [vmem:[%s0 + $0x30] sm:$0xff]
    %v23 = vld [vmem:[%s0 + $0x38] sm:$0xff]
    %v24 = vld [vmem:[%s0 + $0x40] sm:$0xff]
    %v25 = vld [vmem:[%s0 + $0x48] sm:$0xff]
    %v26 = vld [vmem:[%s0 + $0x50] sm:$0xff]
    %v27 = vld [vmem:[%s0 + $0x58] sm:$0xff]
    %v28 = vld [vmem:[%s0 + $0x60] sm:$0xff]
    %v29 = vld [vmem:[%s0 + $0x68] sm:$0xff]
    %v30 = vld [vmem:[%s0 + $0x70] sm:$0xff]
    %v31 = vld [vmem:[%s0 + $0x78] sm:$0xff]
    %v32 = vld [vmem:[%s1] sm:$0xf]
    %v33 = vld [vmem:[%s1 + $0x4] sm:$0xf]
    %v34 = vld [vmem:[%s1 + $0x8] sm:$0xf]
    %v35 = vld [vmem:[%s1 + $0xc] sm:$0xf]
    %v36 = vld [vmem:[%s1 + $0x10] sm:$0xf]
    %v37 = vld [vmem:[%s1 + $0x14] sm:$0xf]
    %v38 = vld [vmem:[%s1 + $0x18] sm:$0xf]
    %v39 = vld [vmem:[%s1 + $0x1c] sm:$0xf]
    %v40 = vld [vmem:[%s1 + $0x20] sm:$0xf]
    %v41 = vld [vmem:[%s1 + $0x24] sm:$0xf]
    %v42 = vld [vmem:[%s1 + $0x28] sm:$0xf]
    %v43 = vld [vmem:[%s1 + $0x2c] sm:$0xf]
    %v44 = vld [vmem:[%s1 + $0x30] sm:$0xf]
    %v45 = vld [vmem:[%s1 + $0x34] sm:$0xf]
    %v46 = vld [vmem:[%s1 + $0x38] sm:$0xf]
    %v47 = vld [vmem:[%s1 + $0x3c] sm:$0xf]
    %v48 = vld [vmem:[%s1 + $0x40] sm:$0xf]
    %v49 = vld [vmem:[%s1 + $0x44] sm:$0xf]
    %v50 = vld [vmem:[%s1 + $0x48] sm:$0xf]
    %v51 = vld [vmem:[%s1 + $0x4c] sm:$0xf]
    %v68 = vunpack.c.l.b16 %v16
    %v69 = vunpack.c.h.b16 %v16
    %v70 = vunpack.c.l.b16 %v17
    %v71 = vunpack.c.h.b16 %v17
    %v72 = vunpack.c.l.b16 %v18
    %v73 = vunpack.c.h.b16 %v18
    %v74 = vunpack.c.l.b16 %v19
    %v75 = vunpack.c.h.b16 %v19
    %v76 = vunpack.c.l.b16 %v20
    %v77 = vunpack.c.h.b16 %v20
    %v78 = vunpack.c.l.b16 %v21
    %v79 = vunpack.c.h.b16 %v21
    %v80 = vunpack.c.l.b16 %v22
    %v81 = vunpack.c.h.b16 %v22
    %v82 = vunpack.c.l.b16 %v23
    %v83 = vunpack.c.h.b16 %v23
    %v84 = vunpack.c.l.b16 %v24
    %v85 = vunpack.c.h.b16 %v24
    %v86 = vunpack.c.l.b16 %v25
    %v87 = vunpack.c.h.b16 %v25
    %v88 = vunpack.c.l.b16 %v26
    %v89 = vunpack.c.h.b16 %v26
    %v90 = vunpack.c.l.b16 %v27
    %v91 = vunpack.c.h.b16 %v27
    %v92 = vunpack.c.l.b16 %v28
    %v93 = vunpack.c.h.b16 %v28
    %v94 = vunpack.c.l.b16 %v29
    %v95 = vunpack.c.h.b16 %v29
    %v96 = vunpack.c.l.b16 %v30
    %v97 = vunpack.c.h.b16 %v30
    %v98 = vunpack.c.l.b16 %v31
    %v99 = vunpack.c.h.b16 %v31
    %v100 = vpack.c.b16 %v70, %v68
    %v101 = vpack.c.b16 %v71, %v69
    %v102 = vpack.c.b16 %v74, %v72
    %v103 = vpack.c.b16 %v75, %v73
    %v104 = vpack.c.b16 %v78, %v76
    %v105 = vpack.c.b16 %v79, %v77
    %v106 = vpack.c.b16 %v82, %v80
    %v107 = vpack.c.b16 %v83, %v81
    %v108 = vpack.c.b16 %v86, %v84
    %v109 = vpack.c.b16 %v87, %v85
    %v110 = vpack.c.b16 %v90, %v88
    %v111 = vpack.c.b16 %v91, %v89
    %v112 = vpack.c.b16 %v94, %v92
    %v113 = vpack.c.b16 %v95, %v93
    %v114 = vpack.c.b16 %v98, %v96
    %v115 = vpack.c.b16 %v99, %v97
    %v144 = vunpack.c.l.b16 %v32
    %v145 = vunpack.c.l.b16 %v33
    %v146 = vunpack.c.l.b16 %v34
    %v147 = vunpack.c.l.b16 %v35
    %v148 = vunpack.c.l.b16 %v36
    %v149 = vunpack.c.l.b16 %v37
    %v150 = vunpack.c.l.b16 %v38
    %v151 = vunpack.c.l.b16 %v39
    %v152 = vunpack.c.l.b16 %v40
    %v153 = vunpack.c.l.b16 %v41
    %v154 = vunpack.c.l.b16 %v42
    %v155 = vunpack.c.l.b16 %v43
    %v156 = vunpack.c.l.b16 %v44
    %v157 = vunpack.c.l.b16 %v45
    %v158 = vunpack.c.l.b16 %v46
    %v159 = vunpack.c.l.b16 %v47
    %v160 = vunpack.c.l.b16 %v48
    %v161 = vunpack.c.l.b16 %v49
    %v162 = vunpack.c.l.b16 %v50
    %v163 = vunpack.c.l.b16 %v51
    %v164 = vpack.c.b16 %v145, %v144
    %v165 = vpack.c.b16 %v147, %v146
    %v166 = vpack.c.b16 %v149, %v148
    %v167 = vpack.c.b16 %v151, %v150
    %v168 = vpack.c.b16 %v153, %v152
    %v169 = vpack.c.b16 %v155, %v154
    %v170 = vpack.c.b16 %v157, %v156
    %v171 = vpack.c.b16 %v159, %v158
    %v172 = vpack.c.b16 %v161, %v160
    %v173 = vpack.c.b16 %v163, %v162
    %vm184 = vcmask 261120
    %v186 = vsel %vm184, %v101, 0
    %v189 = vsel %vm184, %v103, 0
    %v192 = vsel %vm184, %v105, 0
    %v195 = vsel %vm184, %v107, 0
    %v198 = vsel %vm184, %v109, 0
    %v201 = vsel %vm184, %v111, 0
    %v204 = vsel %vm184, %v113, 0
    %v207 = vsel %vm184, %v115, 0
    %209 = vmatprep.subr.bf16.mxu0 0
    %210 = vmatpush1.bf16.msra.mxu0 %v171
    %211 = vmatprep.subr.bf16.mxu0 0
    %212 = vmatpush1.bf16.msra.mxu0 %v170
    %213 = vmatprep.subr.bf16.mxu0 0
    %214 = vmatpush1.bf16.msra.mxu0 %v169
    %215 = vmatprep.subr.bf16.mxu0 0
    %216 = vmatpush1.bf16.msra.mxu0 %v168
    %217 = vmatprep.subr.bf16.mxu0 0
    %218 = vmatpush1.bf16.msra.mxu0 %v167
    %219 = vmatprep.subr.bf16.mxu0 0
    %220 = vmatpush1.bf16.msra.mxu0 %v166
    %221 = vmatprep.subr.bf16.mxu0 0
    %222 = vmatpush1.bf16.msra.mxu0 %v165
    %223 = vmatprep.subr.bf16.mxu0 0
    %224 = vmatpush1.bf16.msra.mxu0 %v164
    %225 = vmatprep.subr.bf16.mxu0 0
    %226 = vmatpush2.bf16.msra.mxu0 0
    %227 = vmatprep.subr.bf16.mxu0 0
    %228 = vmatpush2.bf16.msra.mxu0 0
    %229 = vmatprep.subr.bf16.mxu0 0
    %230 = vmatpush2.bf16.msra.mxu0 0
    %231 = vmatprep.subr.bf16.mxu0 0
    %232 = vmatpush2.bf16.msra.mxu0 0
    %233 = vmatprep.subr.bf16.mxu0 0
    %234 = vmatpush2.bf16.msra.mxu0 0
    %235 = vmatprep.subr.bf16.mxu0 0
    %236 = vmatpush2.bf16.msra.mxu0 0
    %237 = vmatprep.subr.bf16.mxu0 0
    %238 = vmatpush2.bf16.msra.mxu0 %v173
    %239 = vmatprep.subr.bf16.mxu0 0
    %240 = vmatpush2.bf16.msra.mxu0 %v172
    %241 = vmatprep.mubr.bf16.mxu0 %v186
    %242 = vmatmul.mubr.bf16.gmra.mxu0 %v100
    %v243 = vpop.f32.mrf.mxu0
    %v244 = vadd.f32 0.0, %v243
    %v245 = vpop.f32.mrf.mxu0
    %v246 = vpop.f32.mrf.mxu0
    %v247 = vadd.f32 0.0, %v246
    %v248 = vpop.f32.mrf.mxu0
    %249 = vmatprep.mubr.bf16.mxu0 %v189
    %250 = vmatmul.mubr.bf16.gmra.mxu0 %v102
    %v251 = vpop.f32.mrf.mxu0
    %v252 = vadd.f32 0.0, %v251
    %v253 = vpop.f32.mrf.mxu0
    %v254 = vpop.f32.mrf.mxu0
    %v255 = vadd.f32 0.0, %v254
    %v256 = vpop.f32.mrf.mxu0
    %257 = vmatprep.mubr.bf16.mxu0 %v192
    %258 = vmatmul.mubr.bf16.gmra.mxu0 %v104
    %v259 = vpop.f32.mrf.mxu0
    %v260 = vadd.f32 0.0, %v259
    %v261 = vpop.f32.mrf.mxu0
    %v262 = vpop.f32.mrf.mxu0
    %v263 = vadd.f32 0.0, %v262
    %v264 = vpop.f32.mrf.mxu0
    %265 = vmatprep.mubr.bf16.mxu0 %v195
    %266 = vmatmul.mubr.bf16.gmra.mxu0 %v106
    %v267 = vpop.f32.mrf.mxu0
    %v268 = vadd.f32 0.0, %v267
    %v269 = vpop.f32.mrf.mxu0
    %v270 = vpop.f32.mrf.mxu0
    %v271 = vadd.f32 0.0, %v270
    %v272 = vpop.f32.mrf.mxu0
    %273 = vmatprep.mubr.bf16.mxu0 %v198
    %274 = vmatmul.mubr.bf16.gmra.mxu0 %v108
    %v275 = vpop.f32.mrf.mxu0
    %v276 = vadd.f32 0.0, %v275
    %v277 = vpop.f32.mrf.mxu0
    %v278 = vpop.f32.mrf.mxu0
    %v279 = vadd.f32 0.0, %v278
    %v280 = vpop.f32.mrf.mxu0
    %281 = vmatprep.mubr.bf16.mxu0 %v201
    %282 = vmatmul.mubr.bf16.gmra.mxu0 %v110
    %v283 = vpop.f32.mrf.mxu0
    %v284 = vadd.f32 0.0, %v283
    %v285 = vpop.f32.mrf.mxu0
    %v286 = vpop.f32.mrf.mxu0
    %v287 = vadd.f32 0.0, %v286
    %v288 = vpop.f32.mrf.mxu0
    %289 = vmatprep.mubr.bf16.mxu0 %v204
    %290 = vmatmul.mubr.bf16.gmra.mxu0 %v112
    %v291 = vpop.f32.mrf.mxu0
    %v292 = vadd.f32 0.0, %v291
    %v293 = vpop.f32.mrf.mxu0
    %v294 = vpop.f32.mrf.mxu0
    %v295 = vadd.f32 0.0, %v294
    %v296 = vpop.f32.mrf.mxu0
    %297 = vmatprep.mubr.bf16.mxu0 %v207
    %298 = vmatmul.mubr.bf16.gmra.mxu0 %v114
    %v299 = vpop.f32.mrf.mxu0
    %v300 = vadd.f32 0.0, %v299
    %v301 = vpop.f32.mrf.mxu0
    %v302 = vpop.f32.mrf.mxu0
    %v303 = vadd.f32 0.0, %v302
    %v304 = vpop.f32.mrf.mxu0
    %305 = vdwg.mxu0
    %v306 = vlaneseq
    %v307 = vshrl.u32 %v306, 7
    %v308 = vadd.s32 %v307, 8
    %vm309 = vcmp.lt.s32.totalorder %v307, 12
    %vm310 = vcmp.lt.s32.totalorder %v308, 12
    %v311 = vsel %vm309, %v244, -inf
    %v312 = vsel %vm310, %v247, -inf
    %v313 = vsel %vm309, %v252, -inf
    %v314 = vsel %vm310, %v255, -inf
    %v315 = vsel %vm309, %v260, -inf
    %v316 = vsel %vm310, %v263, -inf
    %v317 = vsel %vm309, %v268, -inf
    %v318 = vsel %vm310, %v271, -inf
    %v319 = vsel %vm309, %v276, -inf
    %v320 = vsel %vm310, %v279, -inf
    %v321 = vsel %vm309, %v284, -inf
    %v322 = vsel %vm310, %v287, -inf
    %v323 = vsel %vm309, %v292, -inf
    %v324 = vsel %vm310, %v295, -inf
    %v325 = vsel %vm309, %v300, -inf
    %v326 = vsel %vm310, %v303, -inf
    %v327 = vmax.f32 %v311, %v312
    %v328 = vrot.slane %v327, 4
    %v329 = vmax.f32 %v327, %v328
    %v330 = vrot.slane %v329, 2
    %v331 = vmax.f32 %v329, %v330
    %v332 = vrot.slane %v331, 1
    %v333 = vmax.f32 %v331, %v332
    %v334 = vmax.f32 %v313, %v314
    %v335 = vrot.slane %v334, 4
    %v336 = vmax.f32 %v334, %v335
    %v337 = vrot.slane %v336, 2
    %v338 = vmax.f32 %v336, %v337
    %v339 = vrot.slane %v338, 1
    %v340 = vmax.f32 %v338, %v339
    %v341 = vmax.f32 %v315, %v316
    %v342 = vrot.slane %v341, 4
    %v343 = vmax.f32 %v341, %v342
    %v344 = vrot.slane %v343, 2
    %v345 = vmax.f32 %v343, %v344
    %v346 = vrot.slane %v345, 1
    %v347 = vmax.f32 %v345, %v346
    %v348 = vmax.f32 %v317, %v318
    %v349 = vrot.slane %v348, 4
    %v350 = vmax.f32 %v348, %v349
    %v351 = vrot.slane %v350, 2
    %v352 = vmax.f32 %v350, %v351
    %v353 = vrot.slane %v352, 1
    %v354 = vmax.f32 %v352, %v353
    %v355 = vmax.f32 %v319, %v320
    %v356 = vrot.slane %v355, 4
    %v357 = vmax.f32 %v355, %v356
    %v358 = vrot.slane %v357, 2
    %v359 = vmax.f32 %v357, %v358
    %v360 = vrot.slane %v359, 1
    %v361 = vmax.f32 %v359, %v360
    %v362 = vmax.f32 %v321, %v322
    %v363 = vrot.slane %v362, 4
    %v364 = vmax.f32 %v362, %v363
    %v365 = vrot.slane %v364, 2
    %v366 = vmax.f32 %v364, %v365
    %v367 = vrot.slane %v366, 1
    %v368 = vmax.f32 %v366, %v367
    %v369 = vmax.f32 %v323, %v324
    %v370 = vrot.slane %v369, 4
    %v371 = vmax.f32 %v369, %v370
    %v372 = vrot.slane %v371, 2
    %v373 = vmax.f32 %v371, %v372
    %v374 = vrot.slane %v373, 1
    %v375 = vmax.f32 %v373, %v374
    %v376 = vmax.f32 %v325, %v326
    %v377 = vrot.slane %v376, 4
    %v378 = vmax.f32 %v376, %v377
    %v379 = vrot.slane %v378, 2
    %v380 = vmax.f32 %v378, %v379
    %v381 = vrot.slane %v380, 1
    %v382 = vmax.f32 %v380, %v381
    %v383 = vld [vmem:[%s2] sm:$0x1]
    %v385 = vlaneseq
    %v386 = vshrl.u32 %v385, 7
    %v387 = vsub.s32 0, %v386
    %v388 = vrot.slane %v383, %v387
    %v390 = vadd.f32 %v333, %v388
    %v391 = vadd.f32 %v340, %v388
    %v392 = vadd.f32 %v347, %v388
    %v393 = vadd.f32 %v354, %v388
    %v394 = vadd.f32 %v361, %v388
    %v395 = vadd.f32 %v368, %v388
    %v396 = vadd.f32 %v375, %v388
    %v397 = vadd.f32 %v382, %v388
    %v398 = vmax.f32 %v390, 0.0
    %v399 = vmax.f32 %v391, 0.0
    %v400 = vmax.f32 %v392, 0.0
    %v401 = vmax.f32 %v393, 0.0
    %v402 = vmax.f32 %v394, 0.0
    %v403 = vmax.f32 %v395, 0.0
    %v404 = vmax.f32 %v396, 0.0
    %v405 = vmax.f32 %v397, 0.0
    %v414 = vrot.slane %v399, 7
    %vm415 = vcmask 1041409
    %v416 = vsel %vm415, %v414, %v398
    %v417 = vrot.slane %v400, 6
    %vm418 = vcmask 1042434
    %v419 = vsel %vm418, %v417, %v416
    %v420 = vrot.slane %v401, 5
    %vm421 = vcmask 1043459
    %v422 = vsel %vm421, %v420, %v419
    %v423 = vrot.slane %v402, 4
    %vm424 = vcmask 1044484
    %v425 = vsel %vm424, %v423, %v422
    %v426 = vrot.slane %v403, 3
    %vm427 = vcmask 1045509
    %v428 = vsel %vm427, %v426, %v425
    %v429 = vrot.slane %v404, 2
    %vm430 = vcmask 1046534
    %v431 = vsel %vm430, %v429, %v428
    %v432 = vrot.slane %v405, 1
    %vm433 = vcmask 1047559
    %v434 = vsel %vm433, %v432, %v431
    %436 = vst [vmem:[#allocation2] sm:$0xff] %v434
    // Predicated region
    $region14: #{cnn_forward.1} parent=1 // pred_check
      _
    $region15: #{cnn_forward.1} parent=1 // pred_check_branch
      %438 = sbr.rel (0) target = $region17
    $region16: #{cnn_forward.1} parent=1 // pred_region
      %s440 = ssub.s32 128, 128
      %441 = vsyncadd [#allocation3], %s440
      %s443 = sshll.u32 [#allocation2], 4
      %s444 = int_to_ptr.vmem [resolvable:$true] %s443
      %446 = dma.vmem_to_hbm [thread:$0]  %s444, 128, %s3, [#allocation3]
    $region17: #{cnn_forward.1} parent=1 // pred_fallthru
      _
    // Predicated region
    $region18: #{cnn_forward.1} parent=1 // pred_check
      _
    $region19: #{cnn_forward.1} parent=1 // pred_check_branch
      %448 = sbr.rel (0) target = $region21
    $region20: #{cnn_forward.1} parent=1 // pred_region
      %449 = dma.done [#allocation3], 128
    $region21: #{cnn_forward.1} parent=1 // pred_fallthru
      _
    %450 = vsyncpa [#allocation3], 1

</llo_original>
